<compile_context>
chip_gen: v7x
topology: tpu7x:2x2x1
jax: 0.10.0
libtpu: 0.0.40
codegen_flags: <defaults>
</compile_context>

<pallas_src>
import functools
import math

import jax
import jax.numpy as jnp
from jax.experimental import pallas as pl
from jax.experimental.pallas import tpu as pltpu

_LANES = 128                          # lane-dense last dim (full vreg lane row)
_TILE_BYTES_CAP = 12 * 1024 * 1024    # bytes of input per step (x2 buffers -> 24 MiB live)
_TILE_BYTES_MIN = 2 * 1024 * 1024     # keep steps big enough to hide per-step overhead


def _round_up(x: int, m: int) -> int:
    return ((x + m - 1) // m) * m


def _cdiv(a: int, b: int) -> int:
    return -(-a // b)


def _nll_partial_kernel(mean_ref, var_ref, tgt_ref, out_ref, *,
                        loss_type: str, tile_rows: int, rows_in_last: int):
    """One row-tile: elementwise NLL core -> lane-dense partial sum (1,1,LANES)."""
    mean = mean_ref[...].astype(jnp.float32)
    spread = jnp.maximum(var_ref[...].astype(jnp.float32), 1e-6)  # torch.clamp(min=1e-6)
    tgt = tgt_ref[...].astype(jnp.float32)

    err = tgt - mean
    if loss_type == "gaussian":
        # 0.5 * (...) and 0.5*log(2*pi) folded into the wrapper (exact).
        nll = err * err / spread + jnp.log(spread)
    elif loss_type == "laplace":
        # log(2*scale) = log(2) + log(scale); log(2) folded into the wrapper.
        nll = jnp.abs(err) / spread + jnp.log(spread)
    else:
        raise ValueError(f"Unknown uncertainty loss type: {loss_type}")

    if rows_in_last == tile_rows:
        # Rows divide evenly: no mask anywhere (fast path for every tile).
        out_ref[...] = jnp.sum(nll, axis=0, keepdims=True)[None]
    else:
        g = pl.program_id(0)
        last = pl.num_programs(0) - 1

        @pl.when(g != last)
        def _():
            out_ref[...] = jnp.sum(nll, axis=0, keepdims=True)[None]

        @pl.when(g == last)
        def _():
            # Only the final (partial) block carries out-of-bounds rows; mask them.
            rmask = jax.lax.broadcasted_iota(jnp.int32, nll.shape, 0) < rows_in_last
            out_ref[...] = jnp.sum(jnp.where(rmask, nll, 0.0),
                                   axis=0, keepdims=True)[None]


def uncertainty_loss(mean_pred: jax.Array,
                     var_pred: jax.Array,
                     targets: jax.Array,
                     loss_type: str = "gaussian",
                     tile_rows: int | None = None) -> jax.Array:
    """Pallas equivalent of UncertaintyLoss(loss_type)(mean_pred, var_pred, targets)."""
    if loss_type not in ("gaussian", "laplace"):
        raise ValueError(f"Unknown uncertainty loss type: {loss_type}")
    assert mean_pred.shape == var_pred.shape == targets.shape

    n = int(math.prod(mean_pred.shape))
    lanes = _LANES

    m = mean_pred.reshape(-1)
    v = var_pred.reshape(-1)
    t = targets.reshape(-1)

    n_tail = n % lanes
    n_main = n - n_tail

    total = jnp.zeros((), jnp.float32)

    if n_main > 0:
        if n_tail:
            # TODO(synk): for lane-ragged sizes this slice materializes one copy of
            # the bulk; sizes that are a multiple of 128 take the zero-copy path.
            mb, vb, tb = m[:n_main], v[:n_main], t[:n_main]
        else:
            mb, vb, tb = m, v, t

        rows = n_main // lanes
        mb = mb.reshape(rows, lanes)
        vb = vb.reshape(rows, lanes)
        tb = tb.reshape(rows, lanes)

        itemsizes = [jnp.dtype(a.dtype).itemsize for a in (mb, vb, tb)]
        sub = max(8, 32 // min(itemsizes))       # sublane multiple: f32->8, bf16->16, int8->32
        row_bytes = lanes * sum(itemsizes)

        if tile_rows is not None:
            tr = max(sub, _round_up(min(int(tile_rows), rows), sub))
        else:
            cap_rows = max(sub, _TILE_BYTES_CAP // row_bytes)
            min_rows = max(sub, _TILE_BYTES_MIN // row_bytes)
            tr = _cdiv(rows, 8)                  # aim for >= 8 tiles (v7x 2-TC balance)
            tr = max(tr, min_rows)               # but keep each step's DMA big
            tr = min(tr, cap_rows)               # VMEM budget
            tr = _round_up(tr, sub)
        if tr >= rows:
            tr = rows                            # single block == full array dim (allowed)

        num_tiles = _cdiv(rows, tr)
        rows_in_last = rows - (num_tiles - 1) * tr

        kernel = functools.partial(
            _nll_partial_kernel, loss_type=loss_type,
            tile_rows=tr, rows_in_last=rows_in_last)

        in_spec = pl.BlockSpec((tr, lanes), lambda g: (g, 0))
        out_spec = pl.BlockSpec((1, 1, lanes), lambda g: (g, 0, 0))

        # Double-buffered input tiles + output tiles + margin; explicit so larger
        # tiles never trip the (generation-dependent) default scoped-VMEM limit.
        vmem_limit = 2 * tr * row_bytes + 2 * lanes * 4 + (4 << 20)
        vmem_limit = int(min(max(vmem_limit, 16 << 20), 48 << 20))

        cost = pl.CostEstimate(
            flops=5 * n_main,
            transcendentals=n_main,              # one log per element
            bytes_accessed=n_main * sum(itemsizes) + num_tiles * lanes * 4)

        partials = pl.pallas_call(
            kernel,
            out_shape=jax.ShapeDtypeStruct((num_tiles, 1, lanes), jnp.float32),
            grid_spec=pltpu.PrefetchScalarGridSpec(
                num_scalar_prefetch=0,
                grid=(num_tiles,),
                in_specs=[in_spec, in_spec, in_spec],
                out_specs=out_spec),
            compiler_params=pltpu.CompilerParams(
                dimension_semantics=("parallel",),
                vmem_limit_bytes=vmem_limit),
            cost_estimate=cost,
        )(mb, vb, tb)

        total = total + jnp.sum(partials)

    if n_tail:
        # Tiny (< 128 elem) lane-ragged tail: plain jnp, negligible cost.
        mt = m[n_main:].astype(jnp.float32)
        st = jnp.maximum(v[n_main:].astype(jnp.float32), 1e-6)
        tt = t[n_main:].astype(jnp.float32)
        e = tt - mt
        if loss_type == "gaussian":
            tail = e * e / st + jnp.log(st)
        else:
            tail = jnp.abs(e) / st + jnp.log(st)
        total = total + jnp.sum(tail)

    mean_core = total / n
    if loss_type == "gaussian":
        return 0.5 * mean_core + 0.5 * math.log(2.0 * math.pi)
    return mean_core + math.log(2.0)


def _reference(mean_pred, var_pred, targets, loss_type="gaussian"):
    mean_pred = mean_pred.astype(jnp.float32)
    var_pred = var_pred.astype(jnp.float32)
    targets = targets.astype(jnp.float32)
    if loss_type == "gaussian":
        v = jnp.maximum(var_pred, 1e-6)
        nll = 0.5 * ((targets - mean_pred) ** 2 / v + jnp.log(v)) + 0.5 * math.log(2 * math.pi)
    else:
        s = jnp.maximum(var_pred, 1e-6)
        nll = jnp.abs(targets - mean_pred) / s + jnp.log(2 * s)
    return jnp.mean(nll)


if __name__ == "__main__":
    key = jax.random.PRNGKey(0)
    k1, k2, k3 = jax.random.split(key, 3)

    ok = True

    # Module-spec shape: [B, D] predictions / targets (lane-aligned, zero-copy path).
    B, D = 8, 32
    mean_pred = jax.random.normal(k1, (B, D), dtype=jnp.float32)
    var_pred = jnp.abs(jax.random.normal(k2, (B, D), dtype=jnp.float32)) + 0.1
    targets = jax.random.normal(k3, (B, D), dtype=jnp.float32)

    for lt in ("gaussian", "laplace"):
        out = jax.block_until_ready(
            uncertainty_loss(mean_pred, var_pred, targets, loss_type=lt))
        ref = _reference(mean_pred, var_pred, targets, loss_type=lt)
        if not jnp.allclose(out, ref, rtol=1e-5, atol=1e-4):
            ok = False
            print(f"MISMATCH {lt}: pallas={out} ref={ref}")

    # Ragged shape: multi-tile grid + masked partial last block + jnp lane-tail.
    Bm, Dm = 40, 300  # 12000 elems -> 93 full lane-rows + 96-elem tail
    m2 = jax.random.normal(k1, (Bm, Dm), dtype=jnp.float32)
    v2 = jnp.abs(jax.random.normal(k2, (Bm, Dm), dtype=jnp.float32)) + 0.1
    t2 = jax.random.normal(k3, (Bm, Dm), dtype=jnp.float32)
    for lt in ("gaussian", "laplace"):
        out = jax.block_until_ready(
            uncertainty_loss(m2, v2, t2, loss_type=lt, tile_rows=16))
        ref = _reference(m2, v2, t2, loss_type=lt)
        if not jnp.allclose(out, ref, rtol=1e-5, atol=1e-4):
            ok = False
            print(f"MISMATCH ragged {lt}: pallas={out} ref={ref}")

    # bf16 inputs (halved read bandwidth path, f32 accumulation in-kernel).
    Bb, Db = 16, 64
    m3 = jax.random.normal(k1, (Bb, Db), dtype=jnp.bfloat16)
    v3 = (jnp.abs(jax.random.normal(k2, (Bb, Db), dtype=jnp.float32)) + 0.1).astype(jnp.bfloat16)
    t3 = jax.random.normal(k3, (Bb, Db), dtype=jnp.bfloat16)
    for lt in ("gaussian", "laplace"):
        out = jax.block_until_ready(
            uncertainty_loss(m3, v3, t3, loss_type=lt))
        ref = _reference(m3, v3, t3, loss_type=lt)
        if not jnp.allclose(out, ref, rtol=1e-4, atol=1e-3):
            ok = False
            print(f"MISMATCH bf16 {lt}: pallas={out} ref={ref}")

    if ok:
        print("KERNEL_OK")
</pallas_src>

<mosaic_0001>
module attributes {stable_mosaic.version = 11 : i64} {
  func.func @_nll_partial_kernel(%arg0: i32, %arg1: memref<2x128xf32, #tpu.memory_space<vmem>>, %arg2: memref<2x128xf32, #tpu.memory_space<vmem>>, %arg3: memref<2x128xf32, #tpu.memory_space<vmem>>, %arg4: memref<1x1x128xf32, #tpu.memory_space<vmem>>) attributes {dimension_semantics = [#tpu.dimension_semantics<parallel>], iteration_bounds = array<i64: 1>, scalar_prefetch = 0 : i64, scratch_operands = 0 : i64, tpu.core_type = #tpu.core_type<tc>, window_params = [{transform_indices = @transform_0, window_bounds = array<i64: 2, 128>}, {transform_indices = @transform_1, window_bounds = array<i64: 2, 128>}, {transform_indices = @transform_2, window_bounds = array<i64: 2, 128>}, {transform_indices = @transform_3, window_bounds = array<i64: 1, 1, 128>}]} {
    %c0 = arith.constant 0 : index
    %c0_0 = arith.constant 0 : index
    %0 = vector.load %arg1[%c0, %c0_0] : memref<2x128xf32, #tpu.memory_space<vmem>>, vector<2x128xf32>
    %c0_1 = arith.constant 0 : index
    %c0_2 = arith.constant 0 : index
    %1 = vector.load %arg2[%c0_1, %c0_2] : memref<2x128xf32, #tpu.memory_space<vmem>>, vector<2x128xf32>
    %cst = arith.constant 9.99999997E-7 : f32
    %2 = vector.broadcast %cst : f32 to vector<2x128xf32>
    %3 = arith.maximumf %1, %2 : vector<2x128xf32>
    %c0_3 = arith.constant 0 : index
    %c0_4 = arith.constant 0 : index
    %4 = vector.load %arg3[%c0_3, %c0_4] : memref<2x128xf32, #tpu.memory_space<vmem>>, vector<2x128xf32>
    %5 = arith.subf %4, %0 : vector<2x128xf32>
    %6 = arith.mulf %5, %5 : vector<2x128xf32>
    %7 = arith.divf %6, %3 : vector<2x128xf32>
    %8 = math.log %3 : vector<2x128xf32>
    %9 = arith.addf %7, %8 : vector<2x128xf32>
    %cst_5 = arith.constant dense<0.000000e+00> : vector<128xf32>
    %10 = vector.multi_reduction <add>, %9, %cst_5 [0] : vector<2x128xf32> to vector<128xf32>
    %11 = vector.shape_cast %10 : vector<128xf32> to vector<1x128xf32>
    %12 = vector.shape_cast %11 : vector<1x128xf32> to vector<1x1x128xf32>
    %c0_6 = arith.constant 0 : index
    %c0_7 = arith.constant 0 : index
    %c0_8 = arith.constant 0 : index
    %13 = vector.load %arg4[%c0_6, %c0_7, %c0_8] : memref<1x1x128xf32, #tpu.memory_space<vmem>>, vector<1x1x128xf32>
    tpu.vector_store %arg4[%c0_6, %c0_7, %c0_8], %12 {strides = array<i32>} : memref<1x1x128xf32, #tpu.memory_space<vmem>>, vector<1x1x128xf32>,
    return
  }
  func.func @transform_0(%arg0: i32) -> (i32, i32) {
    %c0_i32 = arith.constant 0 : i32
    %c0_i32_0 = arith.constant 0 : i32
    return %arg0, %c0_i32 : i32, i32
  }
  func.func @transform_1(%arg0: i32) -> (i32, i32) {
    %c0_i32 = arith.constant 0 : i32
    %c0_i32_0 = arith.constant 0 : i32
    return %arg0, %c0_i32 : i32, i32
  }
  func.func @transform_2(%arg0: i32) -> (i32, i32) {
    %c0_i32 = arith.constant 0 : i32
    %c0_i32_0 = arith.constant 0 : i32
    return %arg0, %c0_i32 : i32, i32
  }
  func.func @transform_3(%arg0: i32) -> (i32, i32, i32) {
    %c0_i32 = arith.constant 0 : i32
    %c0_i32_0 = arith.constant 0 : i32
    %c0_i32_1 = arith.constant 0 : i32
    return %arg0, %c0_i32, %c0_i32_0 : i32, i32, i32
  }
}

</mosaic_0001>

<llo_original>
// kernel: tpu_custom_call.1
$region0: #{tpu_custom_call.1}
  #allocation0 [shape = 'u32[]', space=smem, size = 0x4, offset = 0x4, fixed_abs, tag = 'smem constant byte address 0x4 - core index']
  #allocation1 [shape = 'u32[144,128]{1,0:T(1,128)}', space=vmem, size = 0x12000, scoped, tag = 'internal scratch']
  %s0 = inlined_call_operand.hbm [shape: f32[2,128], index: 0, kind: input, shape index: {}]
  %s1 = inlined_call_operand.vmem [shape: f32[2,128], index: 1, kind: input, shape index: {}]
  %s2 = inlined_call_operand.vmem [shape: f32[2,128], index: 2, kind: input, shape index: {}]
  %s3 = inlined_call_operand.hbm [shape: f32[1,1,128], index: 3, kind: output, shape index: {}]
  %s4 = sld [smem:[#allocation0]]
  $region26: #{tpu_custom_call.1} parent=0
    _
  %s6 = ssub.s32 1, %s4
  %s7 = scalar_select 0, %s6, %s4
  $region1: #{tpu_custom_call.1} parent=0
    #allocation2 [shape = 'u8[1024]{0}', space=vmem, size = 0x400, scoped, tag = 'input window, operand 0, single buffered']
    #allocation3 [shape = 's32[1]{0}', space=sflag, size = 0x4, scoped, tag = 'scoped memory for tpu_custom_call.1']
    #allocation4 [shape = 's32[1]{0}', space=sflag, size = 0x4, scoped, tag = 'scoped memory for tpu_custom_call.1']
    #allocation5 [shape = 'u8[512]{0}', space=vmem, size = 0x400, scoped, tag = 'output window, operand 0, single buffered']
    %8 = vsyncpa [#allocation3], 0
    %9 = vsyncpa [#allocation4], 0
    // Predicated region
    $region2: #{tpu_custom_call.1} parent=1 // pred_check
      _
    $region3: #{tpu_custom_call.1} parent=1 // pred_check_branch
      %11 = sbr.rel (0) target = $region5
    $region4: #{tpu_custom_call.1} parent=1 // pred_region
      %s13 = ssub.s32 32, 32
      %14 = vsyncadd [#allocation3], %s13
      %s16 = sshll.u32 [#allocation2], 4
      %s17 = int_to_ptr.vmem [resolvable:$true] %s16
      %19 = dma.hbm_to_vmem [thread:$0]  %s0, 32, %s17, [#allocation3]
    $region5: #{tpu_custom_call.1} parent=1 // pred_fallthru
      _
    // Predicated region
    $region6: #{tpu_custom_call.1} parent=1 // pred_check
      _
    $region7: #{tpu_custom_call.1} parent=1 // pred_check_branch
      %21 = sbr.rel (0) target = $region9
    $region8: #{tpu_custom_call.1} parent=1 // pred_region
      _
    $region9: #{tpu_custom_call.1} parent=1 // pred_fallthru
      _
    // Predicated region
    $region10: #{tpu_custom_call.1} parent=1 // pred_check
      _
    $region11: #{tpu_custom_call.1} parent=1 // pred_check_branch
      %23 = sbr.rel (0) target = $region13
    $region12: #{tpu_custom_call.1} parent=1 // pred_region
      _
    $region13: #{tpu_custom_call.1} parent=1 // pred_fallthru
      _
    // Predicated region
    $region14: #{tpu_custom_call.1} parent=1 // pred_check
      _
    $region15: #{tpu_custom_call.1} parent=1 // pred_check_branch
      %25 = sbr.rel (0) target = $region17
    $region16: #{tpu_custom_call.1} parent=1 // pred_region
      %26 = dma.done [#allocation3], 32
    $region17: #{tpu_custom_call.1} parent=1 // pred_fallthru
      _
    %v27 = vld [vmem:[#allocation2] sm:$0x3]
    %v28 = vld [vmem:[%s1] sm:$0x3]
    %v29 = vmax.f32 %v28, 1e-06
    %v30 = vld [vmem:[%s2] sm:$0x3]
    %v31 = vsub.f32 %v30, %v27
    %v32 = vmul.f32 %v31, %v31
    %v33 = vrcp.pop %v29
    %v34 = vmul.f32 %v32, %v33
    %v35 = vlog2.pop %v29
    %v36 = vmul.f32 %v35, 0.6931472
    %v37 = vadd.f32 %v34, %v36
    %vm38 = vcmask 1041408
    %v39 = vsel %vm38, %v37, 0.0
    %v40 = vrot.slane %v39, 4
    %v41 = vadd.f32 %v39, %v40
    %v42 = vrot.slane %v41, 2
    %v43 = vadd.f32 %v41, %v42
    %v44 = vrot.slane %v43, 1
    %v45 = vadd.f32 %v43, %v44
    %46 = vst [vmem:[#allocation5] sm:$0x1] %v45
    // Predicated region
    $region18: #{tpu_custom_call.1} parent=1 // pred_check
      _
    $region19: #{tpu_custom_call.1} parent=1 // pred_check_branch
      %48 = sbr.rel (0) target = $region21
    $region20: #{tpu_custom_call.1} parent=1 // pred_region
      %s50 = ssub.s32 16, 16
      %51 = vsyncadd [#allocation4], %s50
      %s53 = sshll.u32 [#allocation5], 4
      %s54 = int_to_ptr.vmem [resolvable:$true] %s53
      %56 = dma.vmem_to_hbm [thread:$0]  %s54, 16, %s3, [#allocation4]
    $region21: #{tpu_custom_call.1} parent=1 // pred_fallthru
      _
    // Predicated region
    $region22: #{tpu_custom_call.1} parent=1 // pred_check
      _
    $region23: #{tpu_custom_call.1} parent=1 // pred_check_branch
      %58 = sbr.rel (0) target = $region25
    $region24: #{tpu_custom_call.1} parent=1 // pred_region
      %59 = dma.done [#allocation4], 16
    $region25: #{tpu_custom_call.1} parent=1 // pred_fallthru
      _
    %60 = vsyncpa [#allocation3], 1
    %61 = vsyncpa [#allocation4], 1

</llo_original>
